<compile_context>
chip_gen: v7x
topology: tpu7x:2x2x1
jax: 0.10.0
libtpu: 0.0.40
codegen_flags: <defaults>
</compile_context>

<pallas_src>
import math
import numpy as np
import jax
import jax.numpy as jnp
from jax.experimental import pallas as pl
from jax.experimental.pallas import tpu as pltpu


def sentinel_kernel(h_ref, sg_ref, wh_ref, p_ref, o_ref):
    # h_ref : (Bt, Hd)  hidden_dec tile
    # sg_ref: (Bt, 2)   [last_sentient, maxpooled_graph] tile
    # wh_ref: (Hd, 1)   W[:, :Hd]^T  (weight column for hidden_dec)
    # p_ref : (1, 3)    [w_sentient, w_graph, bias]
    # o_ref : (Bt, 1)   output tile
    score = jnp.dot(h_ref[...], wh_ref[...],
                    preferred_element_type=jnp.float32)            # (Bt, 1) on MXU
    score = (score
             + sg_ref[:, 0:1] * p_ref[:, 0:1]
             + sg_ref[:, 1:2] * p_ref[:, 1:2]
             + p_ref[:, 2:3])
    # TODO(synk): nn.Dropout is identity in eval mode; training-mode stochastic
    #             dropout (pltpu PRNG masking) is intentionally not implemented.
    o_ref[...] = jnp.maximum(score, 0.0)


def graph_laplacian_forward(hidden_dec, last_sentient, maxpooled_graph, W, b,
                            *, block_b=1024):
    """hidden_dec: [B, Hd]  last_sentient: [B]  maxpooled_graph: [B, 1]
       W: [1, Hd+2]  b: [1]   ->  sentient [B, 1]"""
    B, Hd = hidden_dec.shape
    assert W.shape == (1, Hd + 2)

    # Split the concat+Linear: W = [W_h | w_s | w_g]
    wh = jnp.asarray(W[0, :Hd], jnp.float32).reshape(Hd, 1)                  # (Hd, 1)
    params = jnp.concatenate(
        [W[0, Hd:Hd + 2].astype(jnp.float32),
         jnp.asarray(b, jnp.float32).reshape(1)]).reshape(1, 3)              # (1, 3)

    h2 = hidden_dec.astype(jnp.float32)
    sg = jnp.concatenate(
        [last_sentient.reshape(B, 1), maxpooled_graph.reshape(B, 1)],
        axis=-1).astype(jnp.float32)                                         # (B, 2)

    # Batch tile: sublane-aligned; Pallas masks the ragged final block, so no pad copy.
    Bt = min(block_b, ((B + 7) // 8) * 8)
    grid = (pl.cdiv(B, Bt),)

    cost = pl.CostEstimate(flops=2 * B * (Hd + 2),
                           transcendentals=0,
                           bytes_accessed=4 * B * (Hd + 3) + 4 * (Hd + 3))

    out = pl.pallas_call(
        sentinel_kernel,
        out_shape=jax.ShapeDtypeStruct((B, 1), jnp.float32),
        grid_spec=pltpu.PrefetchScalarGridSpec(
            num_scalar_prefetch=0,
            grid=grid,
            in_specs=[
                pl.BlockSpec((Bt, Hd), lambda i: (i, 0)),
                pl.BlockSpec((Bt, 2),  lambda i: (i, 0)),
                pl.BlockSpec((Hd, 1),  lambda i: (0, 0)),
                pl.BlockSpec((1, 3),   lambda i: (0, 0)),
            ],
            out_specs=pl.BlockSpec((Bt, 1), lambda i: (i, 0)),
        ),
        compiler_params=pltpu.CompilerParams(dimension_semantics=("parallel",)),
        cost_estimate=cost,
    )(h2, sg, wh, params)
    return out


def graph_laplacian_reference(hidden_dec, last_sentient, maxpooled_graph, W, b):
    """Pure-JAX reference mirroring the torch forward (dropout in eval mode)."""
    inp = jnp.concatenate(
        [hidden_dec, last_sentient[:, None], maxpooled_graph], axis=-1)
    return jnp.maximum(inp @ W.T + b, 0.0)


if __name__ == "__main__":
    B, Hd = 2, 32

    key = jax.random.PRNGKey(0)
    k_h, k_s, k_g, k_w, k_b = jax.random.split(key, 5)

    hidden_dec = jax.random.normal(k_h, (B, Hd), dtype=jnp.float32)
    last_sentient = jax.random.uniform(k_s, (B,), dtype=jnp.float32)
    maxpooled_graph = jax.random.normal(k_g, (B, 1), dtype=jnp.float32)

    # Parameter init mirroring the module's __init__:
    #   sentinel_gate = nn.Linear(Hd + 2, 1); xavier_normal_ on weight,
    #   default uniform bias init.
    fan_in, fan_out = Hd + 2, 1
    xavier_std = math.sqrt(2.0 / (fan_in + fan_out))
    W = jax.random.normal(k_w, (1, Hd + 2), dtype=jnp.float32) * xavier_std
    bound = 1.0 / math.sqrt(fan_in)
    b = jax.random.uniform(k_b, (1,), dtype=jnp.float32, minval=-bound, maxval=bound)

    sentient = graph_laplacian_forward(hidden_dec, last_sentient, maxpooled_graph, W, b)
    jax.block_until_ready(sentient)

    ref = graph_laplacian_reference(hidden_dec, last_sentient, maxpooled_graph, W, b)
    np.testing.assert_allclose(np.asarray(sentient), np.asarray(ref),
                               rtol=1e-5, atol=1e-6)

    print("KERNEL_OK")
</pallas_src>

<mosaic_0001>
module attributes {stable_mosaic.version = 11 : i64} {
  func.func @sentinel_kernel(%arg0: i32, %arg1: memref<8x32xf32, #tpu.memory_space<vmem>>, %arg2: memref<8x2xf32, #tpu.memory_space<vmem>>, %arg3: memref<32x1xf32, #tpu.memory_space<vmem>>, %arg4: memref<1x3xf32, #tpu.memory_space<vmem>>, %arg5: memref<8x1xf32, #tpu.memory_space<vmem>>) attributes {dimension_semantics = [#tpu.dimension_semantics<parallel>], iteration_bounds = array<i64: 1>, scalar_prefetch = 0 : i64, scratch_operands = 0 : i64, tpu.core_type = #tpu.core_type<tc>, window_params = [{transform_indices = @transform_0, window_bounds = array<i64: 8, 32>}, {transform_indices = @transform_1, window_bounds = array<i64: 8, 2>}, {pipeline_mode = #tpu.pipeline_mode<synchronous>, transform_indices = @transform_2, window_bounds = array<i64: 32, 1>}, {pipeline_mode = #tpu.pipeline_mode<synchronous>, transform_indices = @transform_3, window_bounds = array<i64: 1, 3>}, {transform_indices = @transform_4, window_bounds = array<i64: 8, 1>}]} {
    %c0 = arith.constant 0 : index
    %c0_0 = arith.constant 0 : index
    %0 = vector.load %arg1[%c0, %c0_0] : memref<8x32xf32, #tpu.memory_space<vmem>>, vector<8x32xf32>
    %c0_1 = arith.constant 0 : index
    %c0_2 = arith.constant 0 : index
    %1 = vector.load %arg3[%c0_1, %c0_2] : memref<32x1xf32, #tpu.memory_space<vmem>>, vector<32x1xf32>
    %cst = arith.constant dense<0.000000e+00> : vector<8x1xf32>
    %2 = tpu.matmul %0, %1, %cst {dimension_numbers = #tpu.dot_dimension_numbers<[1], [0], [0], [1], [0, 0, 1, 1], [], []>} : vector<8x32xf32>, vector<32x1xf32>, vector<8x1xf32> -> vector<8x1xf32>
    %c0_3 = arith.constant 0 : index
    %c0_4 = arith.constant 0 : index
    %3 = vector.load %arg2[%c0_3, %c0_4] : memref<8x2xf32, #tpu.memory_space<vmem>>, vector<8x1xf32>
    %c0_5 = arith.constant 0 : index
    %c0_6 = arith.constant 0 : index
    %4 = vector.load %arg4[%c0_5, %c0_6] : memref<1x3xf32, #tpu.memory_space<vmem>>, vector<1x1xf32>
    %5 = vector.broadcast %4 : vector<1x1xf32> to vector<8x1xf32>
    %6 = arith.mulf %3, %5 : vector<8x1xf32>
    %7 = arith.addf %2, %6 : vector<8x1xf32>
    %c0_7 = arith.constant 0 : index
    %c1 = arith.constant 1 : index
    %8 = vector.load %arg2[%c0_7, %c1] : memref<8x2xf32, #tpu.memory_space<vmem>>, vector<8x1xf32>
    %c0_8 = arith.constant 0 : index
    %c1_9 = arith.constant 1 : index
    %9 = vector.load %arg4[%c0_8, %c1_9] : memref<1x3xf32, #tpu.memory_space<vmem>>, vector<1x1xf32>
    %10 = vector.broadcast %9 : vector<1x1xf32> to vector<8x1xf32>
    %11 = arith.mulf %8, %10 : vector<8x1xf32>
    %12 = arith.addf %7, %11 : vector<8x1xf32>
    %c0_10 = arith.constant 0 : index
    %c2 = arith.constant 2 : index
    %13 = vector.load %arg4[%c0_10, %c2] : memref<1x3xf32, #tpu.memory_space<vmem>>, vector<1x1xf32>
    %14 = vector.broadcast %13 : vector<1x1xf32> to vector<8x1xf32>
    %15 = arith.addf %12, %14 : vector<8x1xf32>
    %cst_11 = arith.constant 0.000000e+00 : f32
    %16 = vector.broadcast %cst_11 : f32 to vector<8x1xf32>
    %17 = arith.maximumf %15, %16 : vector<8x1xf32>
    %c0_12 = arith.constant 0 : index
    %c0_13 = arith.constant 0 : index
    %18 = vector.load %arg5[%c0_12, %c0_13] : memref<8x1xf32, #tpu.memory_space<vmem>>, vector<8x1xf32>
    tpu.vector_store %arg5[%c0_12, %c0_13], %17 {strides = array<i32>} : memref<8x1xf32, #tpu.memory_space<vmem>>, vector<8x1xf32>,
    return
  }
  func.func @transform_0(%arg0: i32) -> (i32, i32) {
    %c0_i32 = arith.constant 0 : i32
    %c0_i32_0 = arith.constant 0 : i32
    return %arg0, %c0_i32 : i32, i32
  }
  func.func @transform_1(%arg0: i32) -> (i32, i32) {
    %c0_i32 = arith.constant 0 : i32
    %c0_i32_0 = arith.constant 0 : i32
    return %arg0, %c0_i32 : i32, i32
  }
  func.func @transform_2(%arg0: i32) -> (i32, i32) {
    %c0_i32 = arith.constant 0 : i32
    %c0_i32_0 = arith.constant 0 : i32
    %c0_i32_1 = arith.constant 0 : i32
    return %c0_i32, %c0_i32_0 : i32, i32
  }
  func.func @transform_3(%arg0: i32) -> (i32, i32) {
    %c0_i32 = arith.constant 0 : i32
    %c0_i32_0 = arith.constant 0 : i32
    %c0_i32_1 = arith.constant 0 : i32
    return %c0_i32, %c0_i32_0 : i32, i32
  }
  func.func @transform_4(%arg0: i32) -> (i32, i32) {
    %c0_i32 = arith.constant 0 : i32
    %c0_i32_0 = arith.constant 0 : i32
    return %arg0, %c0_i32 : i32, i32
  }
}

</mosaic_0001>

<llo_original>
// kernel: tpu_custom_call.1
$region0: #{tpu_custom_call.1}
  #allocation0 [shape = 'u32[]', space=smem, size = 0x4, offset = 0x4, fixed_abs, tag = 'smem constant byte address 0x4 - core index']
  #allocation1 [shape = 'u32[144,128]{1,0:T(1,128)}', space=vmem, size = 0x12000, scoped, tag = 'internal scratch']
  %s0 = inlined_call_operand.vmem [shape: f32[2,32], index: 0, kind: input, shape index: {}]
  %s1 = inlined_call_operand.vmem [shape: f32[2,2], index: 1, kind: input, shape index: {}]
  %s2 = inlined_call_operand.vmem [shape: f32[32,1], index: 2, kind: input, shape index: {}]
  %s3 = inlined_call_operand.vmem [shape: f32[1,3], index: 3, kind: input, shape index: {}]
  %s4 = inlined_call_operand.vmem [shape: f32[2,1], index: 4, kind: output, shape index: {}]
  %s5 = sld [smem:[#allocation0]]
  $region56: #{tpu_custom_call.1} parent=0
    _
  %s7 = ssub.s32 1, %s5
  %s8 = scalar_select 0, %s7, %s5
  $region1: #{tpu_custom_call.1} parent=0
    #allocation2 [shape = 'u8[4096]{0}', space=vmem, size = 0x1000, scoped, tag = 'output window, operand 0, single buffered']
    // Predicated region
    $region2: #{tpu_custom_call.1} parent=1 // pred_check
      _
    $region3: #{tpu_custom_call.1} parent=1 // pred_check_branch
      %10 = sbr.rel (0) target = $region5
    $region4: #{tpu_custom_call.1} parent=1 // pred_region
      _
    $region5: #{tpu_custom_call.1} parent=1 // pred_fallthru
      _
    // Predicated region
    $region6: #{tpu_custom_call.1} parent=1 // pred_check
      _
    $region7: #{tpu_custom_call.1} parent=1 // pred_check_branch
      %12 = sbr.rel (0) target = $region9
    $region8: #{tpu_custom_call.1} parent=1 // pred_region
      _
    $region9: #{tpu_custom_call.1} parent=1 // pred_fallthru
      _
    // Predicated region
    $region10: #{tpu_custom_call.1} parent=1 // pred_check
      _
    $region11: #{tpu_custom_call.1} parent=1 // pred_check_branch
      %14 = sbr.rel (0) target = $region13
    $region12: #{tpu_custom_call.1} parent=1 // pred_region
      _
    $region13: #{tpu_custom_call.1} parent=1 // pred_fallthru
      _
    // Predicated region
    $region14: #{tpu_custom_call.1} parent=1 // pred_check
      _
    $region15: #{tpu_custom_call.1} parent=1 // pred_check_branch
      %16 = sbr.rel (0) target = $region17
    $region16: #{tpu_custom_call.1} parent=1 // pred_region
      _
    $region17: #{tpu_custom_call.1} parent=1 // pred_fallthru
      _
    %v17 = vld [vmem:[%s0] sm:$0xff]
    %v18 = vld [vmem:[%s2] sm:$0xff]
    %v19 = vld [vmem:[%s2 + $0x8] sm:$0xff]
    %v20 = vld [vmem:[%s2 + $0x10] sm:$0xff]
    %v21 = vld [vmem:[%s2 + $0x18] sm:$0xff]
    %v22 = vld [vmem:[%s1] sm:$0xff]
    %v23 = vld [vmem:[%s3] sm:$0x1]
    %v25 = vlaneseq
    %v26 = vshrl.u32 %v25, 7
    %v27 = vsub.s32 0, %v26
    %v28 = vrot.slane %v23, %v27
    %v30 = vmul.f32 %v22, %v28
    %vm31 = vcmask 261120
    %v33 = vsel %vm31, %v17, 0
    %35 = vmatprep.subr.mxu0 0.0
    %36 = vmatpush1.msra.mxu0 %v18
    %37 = vmatprep.subr.mxu0 0.0
    %38 = vmatpush1.msra.mxu0 %v19
    %39 = vmatprep.subr.mxu0 0.0
    %40 = vmatpush1.msra.mxu0 %v20
    %41 = vmatprep.subr.mxu0 0.0
    %42 = vmatpush1.msra.mxu0 %v21
    %43 = vmatprep.subr.mxu0 0.0
    %44 = vmatpush1.msra.mxu0 0.0
    %45 = vmatprep.subr.mxu0 0.0
    %46 = vmatpush1.msra.mxu0 0.0
    %47 = vmatprep.subr.mxu0 0.0
    %48 = vmatpush1.msra.mxu0 0.0
    %49 = vmatprep.subr.mxu0 0.0
    %50 = vmatpush1.msra.mxu0 0.0
    %51 = vmatprep.subr.mxu0 0.0
    %52 = vmatpush1.msra.mxu0 0.0
    %53 = vmatprep.subr.mxu0 0.0
    %54 = vmatpush1.msra.mxu0 0.0
    %55 = vmatprep.subr.mxu0 0.0
    %56 = vmatpush1.msra.mxu0 0.0
    %57 = vmatprep.subr.mxu0 0.0
    %58 = vmatpush1.msra.mxu0 0.0
    %59 = vmatprep.subr.mxu0 0.0
    %60 = vmatpush1.msra.mxu0 0.0
    %61 = vmatprep.subr.mxu0 0.0
    %62 = vmatpush1.msra.mxu0 0.0
    %63 = vmatprep.subr.mxu0 0.0
    %64 = vmatpush1.msra.mxu0 0.0
    %65 = vmatprep.subr.mxu0 0.0
    %66 = vmatpush1.msra.mxu0 0.0
    %67 = vmatprep.subr.mxu0 0.0
    %68 = vmatpush1.msra.mxu0 0.0
    %69 = vmatprep.subr.mxu0 0.0
    %70 = vmatpush1.msra.mxu0 0.0
    %71 = vmatprep.subr.mxu0 0.0
    %72 = vmatpush1.msra.mxu0 0.0
    %73 = vmatprep.subr.mxu0 0.0
    %74 = vmatpush1.msra.mxu0 0.0
    %75 = vmatprep.subr.mxu0 0.0
    %76 = vmatpush1.msra.mxu0 0.0
    %77 = vmatprep.subr.mxu0 0.0
    %78 = vmatpush1.msra.mxu0 0.0
    %79 = vmatprep.subr.mxu0 0.0
    %80 = vmatpush1.msra.mxu0 0.0
    %81 = vmatprep.subr.mxu0 0.0
    %82 = vmatpush1.msra.mxu0 0.0
    %83 = vmatprep.subr.mxu0 0.0
    %84 = vmatpush1.msra.mxu0 0.0
    %85 = vmatprep.subr.mxu0 0.0
    %86 = vmatpush1.msra.mxu0 0.0
    %87 = vmatprep.subr.mxu0 0.0
    %88 = vmatpush1.msra.mxu0 0.0
    %89 = vmatprep.subr.mxu0 0.0
    %90 = vmatpush1.msra.mxu0 0.0
    %91 = vmatprep.subr.mxu0 0.0
    %92 = vmatpush1.msra.mxu0 0.0
    %93 = vmatprep.subr.mxu0 0.0
    %94 = vmatpush1.msra.mxu0 0.0
    %95 = vmatprep.subr.mxu0 0.0
    %96 = vmatpush1.msra.mxu0 0.0
    %97 = vmatprep.subr.mxu0 0.0
    %98 = vmatpush1.msra.mxu0 0.0
    %99 = vmatprep.mubr.f32.mxu0 0.0
    %100 = vmatmul.mubr.f32.gmra.mrb[0].mxu0 %v33
    %v101 = vpop.f32.mrb[0].mxu0
    %v102 = vadd.f32 %v30, %v101
    %v103 = vpop.f32.mrb[0].mxu0
    %104 = vdwg.mxu0
    %106 = vrot.lane.b32.xlu0 %v30, 127
    %v107 = vpop.permute.xlu0 %106
    %v109 = vadd.f32 %v102, %v107
    %110 = vrot.lane.b32.xlu0 %v28, 126
    %v111 = vpop.permute.xlu0 %110
    %v113 = vadd.f32 %v109, %v111
    %v114 = vmax.f32 %v113, 0.0
    %vm115 = vcmask 7168
    %116 = vst.msk [vmem:[#allocation2] sm:$0xff] %vm115, %v114
    // Predicated region
    $region18: #{tpu_custom_call.1} parent=1 // pred_check
      _
    $region19: #{tpu_custom_call.1} parent=1 // pred_check_branch
      %118 = sbr.rel (0) target = $region21
    $region20: #{tpu_custom_call.1} parent=1 // pred_region
      // Predicated region
      $region22: #{tpu_custom_call.1} parent=20 // pred_check
        _
      $region23: #{tpu_custom_call.1} parent=20 // pred_check_branch
        %120 = sbr.rel (0) target = $region25
      $region24: #{tpu_custom_call.1} parent=20 // pred_region
        // Predicated region
        $region26: #{tpu_custom_call.1} parent=24 // pred_check
          _
        $region27: #{tpu_custom_call.1} parent=24 // pred_check_branch
          %122 = sbr.rel target = $region29
        $region28: #{tpu_custom_call.1} parent=24 // pred_region
          // Predicated region
          $region41: #{tpu_custom_call.1} parent=28 // pred_check
            _
          $region42: #{tpu_custom_call.1} parent=28 // pred_check_branch
            %137 = sbr.rel (0) target = $region44
          $region43: #{tpu_custom_call.1} parent=28 // pred_region
            loop: start=0, step=1, limit=1
            $region45: #{tpu_custom_call.1} parent=43 // loop_pre_header
              _
            $region46: #{tpu_custom_call.1} parent=43 // loop_header
              %s140 = sphi 0, %s144
              %p141 = scmp.ge.s32.totalorder %s140, 1
              %s145 = sphi [#allocation2], [#allocation2]
              %s146 = sphi %s4, %s4
            $region47: #{tpu_custom_call.1} parent=43 // loop_header_branch
              %143 = sbr.rel (%p141) target = $region51
            $region48: #{tpu_custom_call.1} parent=43 // loop_body
              %v147 = vld [vmem:[%s145] sm:$0x3]
              %148 = vst [vmem:[%s146] sm:$0x3] %v147
            $region49: #{tpu_custom_call.1} parent=43 // loop_footer
              %s144 = sadd.s32 1, %s140
            $region50: #{tpu_custom_call.1} parent=43 // loop_footer_branch
              %139 = sbr.rel target = $region46
            $region51: #{tpu_custom_call.1} parent=43 // loop_exit
              _
          $region44: #{tpu_custom_call.1} parent=28 // pred_fallthru
            _
        $region29: #{tpu_custom_call.1} parent=24 // pred_fallthru
          _
        // Predicated region
        $region30: #{tpu_custom_call.1} parent=24 // pred_check
          _
        $region31: #{tpu_custom_call.1} parent=24 // pred_check_branch
          %124 = sbr.rel (0) target = $region33
        $region32: #{tpu_custom_call.1} parent=24 // pred_region
          loop: start=0, step=1, limit=1
          $region34: #{tpu_custom_call.1} parent=32 // loop_pre_header
            _
          $region35: #{tpu_custom_call.1} parent=32 // loop_header
            %s127 = sphi 0, %s131
            %p128 = scmp.ge.s32.totalorder %s127, 1
            %s132 = sphi [#allocation2], [#allocation2]
            %s133 = sphi %s4, %s4
          $region36: #{tpu_custom_call.1} parent=32 // loop_header_branch
            %130 = sbr.rel (%p128) target = $region40
          $region37: #{tpu_custom_call.1} parent=32 // loop_body
            %v134 = vld [vmem:[%s132] sm:$0x3]
            %135 = vst [vmem:[%s133] sm:$0x3] %v134
          $region38: #{tpu_custom_call.1} parent=32 // loop_footer
            %s131 = sadd.s32 1, %s127
          $region39: #{tpu_custom_call.1} parent=32 // loop_footer_branch
            %126 = sbr.rel target = $region35
          $region40: #{tpu_custom_call.1} parent=32 // loop_exit
            _
        $region33: #{tpu_custom_call.1} parent=24 // pred_fallthru
          _
      $region25: #{tpu_custom_call.1} parent=20 // pred_fallthru
        _
      %149 = vnop
    $region21: #{tpu_custom_call.1} parent=1 // pred_fallthru
      _
    // Predicated region
    $region52: #{tpu_custom_call.1} parent=1 // pred_check
      _
    $region53: #{tpu_custom_call.1} parent=1 // pred_check_branch
      %151 = sbr.rel (0) target = $region55
    $region54: #{tpu_custom_call.1} parent=1 // pred_region
      _
    $region55: #{tpu_custom_call.1} parent=1 // pred_fallthru
      _

</llo_original>
